<compile_context>
chip_gen: v7x
topology: tpu7x:2x2x1
jax: 0.10.0
libtpu: 0.0.40
codegen_flags: <defaults>
</compile_context>

<pallas_src>
import math

import jax
import jax.numpy as jnp
from jax import lax
from jax.experimental import pallas as pl
from jax.experimental.pallas import tpu as pltpu


def _round_up(x: int, m: int) -> int:
    return pl.cdiv(x, m) * m


def _vmem_capacity_bytes() -> int:
    try:
        cap = int(getattr(pltpu.get_tpu_info(), "vmem_capacity_bytes"))
        if cap > 0:
            return cap
    except Exception:
        pass
    return 64 * 1024 * 1024  # assume the tightest (v7x) per-core budget


# ------------------------------ Pallas kernel ------------------------------ #
def _mention_word_scorer_kernel(wa_ref, starts_ref, ends_ref, o_ref):
    tc, wp = o_ref.shape
    wa = wa_ref[...]                                         # (1, wp) f32 (pad cols = -1e30)
    word_ids = lax.broadcasted_iota(jnp.int32, (1, wp), 1)   # (1, wp)
    starts = starts_ref[...]                                 # (tc, 1) int32
    ends = ends_ref[...]                                     # (tc, 1) int32
    in_span = (word_ids >= starts) & (word_ids <= ends)      # (tc, wp) via broadcast

    # log(mask + 1e-10): in-span -> log(1 + 1e-10) == 0 in f32; else log(1e-10).
    log_eps = jnp.float32(math.log(1e-10))
    logits = wa + jnp.where(in_span, jnp.float32(0.0), log_eps)   # (tc, wp)

    m = jnp.max(logits, axis=-1, keepdims=True)
    e = jnp.exp(logits - m)
    s = jnp.sum(e, axis=-1, keepdims=True)
    inv = pl.reciprocal(s, approx=False)                     # exact, only tc values
    o_ref[...] = (e * inv).astype(o_ref.dtype)


# --------------------------------- wrapper --------------------------------- #
def mention_word_scorer(encoded_doc, span_starts, span_ends, weight, bias,
                        *, tile_c: int = 256, out_dtype=jnp.float32):
    """Pallas forward of MentionWordScorer.

    encoded_doc : (num_words, emb) f32
    span_starts : (num_c,)  int
    span_ends   : (num_c,)  int
    weight      : (1, emb)  f32   (torch nn.Linear(emb, 1).weight layout)
    bias        : (1,)      f32
    returns     : (num_c, num_words) out_dtype
    """
    num_words, emb = encoded_doc.shape
    num_c = span_starts.shape[0]

    wp = _round_up(max(num_words, 128), 128)                 # lane-dense stores
    out_isize = jnp.dtype(out_dtype).itemsize

    # ---- candidate tiling: balanced, then clamped to a VMEM budget -------- #
    cap = _vmem_capacity_bytes()
    c8 = _round_up(max(num_c, 8), 8)
    tile_c = max(8, min(int(tile_c), c8))
    n_steps = pl.cdiv(c8, tile_c)
    tc = _round_up(pl.cdiv(c8, n_steps), 8)                  # balanced tile (<8 pad rows/step)

    # Per-row per-step VMEM: 2x output double-buffer + ~4 f32 kernel temps.
    bytes_per_row = wp * (2 * out_isize + 4 * 4)
    budget = int(0.7 * cap)
    max_tc = max(8, ((budget - 8 * wp) // max(bytes_per_row, 1)) // 8 * 8)
    tc = max(8, min(tc, max_tc))

    num_c_pad = _round_up(num_c, tc)
    grid_steps = num_c_pad // tc

    # ---- wrapper-side prep: tiny projection + layout plumbing ------------- #
    # word_attn = encoded_doc @ weight.T + bias at HIGHEST precision (matches
    # the reference exactly; bias is softmax-shift-invariant but free here).
    wa = jnp.dot(encoded_doc.astype(jnp.float32),
                 weight.astype(jnp.float32).reshape(emb),
                 precision=lax.Precision.HIGHEST) + bias.astype(jnp.float32)[0]
    wa = jnp.pad(wa.reshape(1, num_words), ((0, 0), (0, wp - num_words)),
                 constant_values=-1e30)          # padded word cols contribute 0

    starts = jnp.pad(span_starts.astype(jnp.int32).reshape(num_c, 1),
                     ((0, num_c_pad - num_c), (0, 0)))
    ends = jnp.pad(span_ends.astype(jnp.int32).reshape(num_c, 1),
                   ((0, num_c_pad - num_c), (0, 0)), constant_values=-1)

    est = (2 * wp * 4 + 2 * 2 * (2 * tc * 4)
           + 2 * tc * wp * out_isize + 4 * tc * wp * 4)
    vmem_limit = int(min(max(2 * est, 32 * 1024 * 1024), int(0.9 * cap)))

    cost = pl.CostEstimate(
        flops=int(6 * num_c_pad * wp),
        transcendentals=int(num_c_pad * wp),
        bytes_accessed=int(4 * (wp + 2 * num_c_pad)
                           + out_isize * num_c_pad * wp),
    )

    out = pl.pallas_call(
        _mention_word_scorer_kernel,
        out_shape=jax.ShapeDtypeStruct((num_c_pad, wp), out_dtype),
        grid_spec=pltpu.PrefetchScalarGridSpec(
            num_scalar_prefetch=0,
            grid=(grid_steps,),
            in_specs=[
                pl.BlockSpec((1, wp), lambda i: (0, 0)),    # word_attn (VMEM resident)
                pl.BlockSpec((tc, 1), lambda i: (i, 0)),    # span starts (streamed)
                pl.BlockSpec((tc, 1), lambda i: (i, 0)),    # span ends   (streamed)
            ],
            out_specs=pl.BlockSpec((tc, wp), lambda i: (i, 0)),
        ),
        compiler_params=pltpu.CompilerParams(
            dimension_semantics=("parallel",),
            vmem_limit_bytes=vmem_limit,
        ),
        cost_estimate=cost,
    )(wa, starts, ends)

    return out[:num_c, :num_words]


# ------------------------- pure-JAX reference ------------------------------ #
def mention_word_scorer_reference(encoded_doc, span_starts, span_ends, weight,
                                  bias):
    num_words = encoded_doc.shape[0]
    doc_range = jnp.arange(num_words)[None, :]
    mask = ((doc_range >= span_starts[:, None]) &
            (doc_range <= span_ends[:, None])).astype(jnp.float32)
    word_attn = (jnp.dot(encoded_doc, weight.T,
                         precision=jax.lax.Precision.HIGHEST) + bias)[:, 0]
    logits = jnp.log(mask + 1e-10) + word_attn[None, :]
    return jax.nn.softmax(logits, axis=-1)


# ----------------------------------- main ---------------------------------- #
if __name__ == "__main__":
    # Config 1: small doc (40 words, emb=32), 6 spans.
    num_words, emb, num_c = 40, 32, 6
    key = jax.random.PRNGKey(0)
    k_doc, k_w, k_b, k_s, k_l = jax.random.split(key, 5)
    bound = 1.0 / math.sqrt(emb)
    encoded_doc = jax.random.normal(k_doc, (num_words, emb), jnp.float32)
    weight = jax.random.uniform(k_w, (1, emb), jnp.float32, -bound, bound)
    bias = jax.random.uniform(k_b, (1,), jnp.float32, -bound, bound)
    span_starts = jax.random.randint(k_s, (num_c,), 0, num_words, jnp.int32)
    span_lens = jax.random.randint(k_l, (num_c,), 0, 6, jnp.int32)
    span_ends = jnp.minimum(span_starts + span_lens, num_words - 1)

    out = jax.block_until_ready(
        mention_word_scorer(encoded_doc, span_starts, span_ends, weight, bias))
    assert out.shape == (num_c, num_words), out.shape
    ref = mention_word_scorer_reference(encoded_doc, span_starts, span_ends,
                                        weight, bias)
    assert jnp.allclose(out, ref, atol=1e-5, rtol=1e-5), \
        float(jnp.max(jnp.abs(out - ref)))
    assert jnp.allclose(jnp.sum(out, axis=-1), 1.0, atol=1e-5)

    # Config 2: multi-step grid (tile_c=8) + padded word columns (200 -> 256).
    num_words2, num_c2 = 200, 20
    k2 = jax.random.PRNGKey(1)
    k_doc2, k_s2, k_l2 = jax.random.split(k2, 3)
    doc2 = jax.random.normal(k_doc2, (num_words2, emb), jnp.float32)
    s2 = jax.random.randint(k_s2, (num_c2,), 0, num_words2, jnp.int32)
    e2 = jnp.minimum(
        s2 + jax.random.randint(k_l2, (num_c2,), 0, 10, jnp.int32),
        num_words2 - 1)
    out2 = jax.block_until_ready(
        mention_word_scorer(doc2, s2, e2, weight, bias, tile_c=8))
    assert out2.shape == (num_c2, num_words2), out2.shape
    ref2 = mention_word_scorer_reference(doc2, s2, e2, weight, bias)
    assert jnp.allclose(out2, ref2, atol=1e-5, rtol=1e-5), \
        float(jnp.max(jnp.abs(out2 - ref2)))

    # Config 3: bf16 output option (halves HBM writeback) — smoke check.
    out3 = jax.block_until_ready(
        mention_word_scorer(doc2, s2, e2, weight, bias,
                            out_dtype=jnp.bfloat16))
    assert out3.shape == (num_c2, num_words2) and out3.dtype == jnp.bfloat16
    assert jnp.allclose(out3.astype(jnp.float32), ref2, atol=2e-2)

    print("KERNEL_OK")
</pallas_src>

<mosaic_0001>
module attributes {stable_mosaic.version = 11 : i64} {
  func.func @_mention_word_scorer_kernel(%arg0: i32, %arg1: memref<1x128xf32, #tpu.memory_space<vmem>>, %arg2: memref<8x1xi32, #tpu.memory_space<vmem>>, %arg3: memref<8x1xi32, #tpu.memory_space<vmem>>, %arg4: memref<8x128xf32, #tpu.memory_space<vmem>>) attributes {dimension_semantics = [#tpu.dimension_semantics<parallel>], iteration_bounds = array<i64: 1>, scalar_prefetch = 0 : i64, scratch_operands = 0 : i64, tpu.core_type = #tpu.core_type<tc>, window_params = [{pipeline_mode = #tpu.pipeline_mode<synchronous>, transform_indices = @transform_0, window_bounds = array<i64: 1, 128>}, {transform_indices = @transform_1, window_bounds = array<i64: 8, 1>}, {transform_indices = @transform_2, window_bounds = array<i64: 8, 1>}, {transform_indices = @transform_3, window_bounds = array<i64: 8, 128>}]} {
    %c0 = arith.constant 0 : index
    %c0_0 = arith.constant 0 : index
    %0 = vector.load %arg1[%c0, %c0_0] : memref<1x128xf32, #tpu.memory_space<vmem>>, vector<1x128xf32>
    %1 = tpu.iota {dimensions = array<i32: 1>} : vector<1x128xi32>
    %c0_1 = arith.constant 0 : index
    %c0_2 = arith.constant 0 : index
    %2 = vector.load %arg2[%c0_1, %c0_2] : memref<8x1xi32, #tpu.memory_space<vmem>>, vector<8x1xi32>
    %c0_3 = arith.constant 0 : index
    %c0_4 = arith.constant 0 : index
    %3 = vector.load %arg3[%c0_3, %c0_4] : memref<8x1xi32, #tpu.memory_space<vmem>>, vector<8x1xi32>
    %4 = vector.broadcast %1 : vector<1x128xi32> to vector<8x128xi32>
    %5 = vector.broadcast %2 : vector<8x1xi32> to vector<8x128xi32>
    %6 = arith.cmpi sge, %4, %5 : vector<8x128xi32>
    %7 = vector.broadcast %1 : vector<1x128xi32> to vector<8x128xi32>
    %8 = vector.broadcast %3 : vector<8x1xi32> to vector<8x128xi32>
    %9 = arith.cmpi sle, %7, %8 : vector<8x128xi32>
    %10 = arith.andi %6, %9 : vector<8x128xi1>
    %cst = arith.constant 0.000000e+00 : f32
    %cst_5 = arith.constant -23.0258503 : f32
    %11 = vector.broadcast %cst : f32 to vector<8x128xf32>
    %12 = vector.broadcast %cst_5 : f32 to vector<8x128xf32>
    %13 = arith.select %10, %11, %12 : vector<8x128xi1>, vector<8x128xf32>
    %14 = vector.broadcast %0 : vector<1x128xf32> to vector<8x128xf32>
    %15 = arith.addf %14, %13 : vector<8x128xf32>
    %cst_6 = arith.constant dense<0xFF800000> : vector<8xf32>
    %16 = vector.multi_reduction <maximumf>, %15, %cst_6 [1] : vector<8x128xf32> to vector<8xf32>
    %17 = vector.shape_cast %16 : vector<8xf32> to vector<8x1xf32>
    %18 = vector.broadcast %17 : vector<8x1xf32> to vector<8x128xf32>
    %19 = arith.subf %15, %18 : vector<8x128xf32>
    %20 = math.exp %19 : vector<8x128xf32>
    %cst_7 = arith.constant dense<0.000000e+00> : vector<8xf32>
    %21 = vector.multi_reduction <add>, %20, %cst_7 [1] : vector<8x128xf32> to vector<8xf32>
    %22 = vector.shape_cast %21 : vector<8xf32> to vector<8x1xf32>
    %23 = tpu.reciprocal %22 : vector<8x1xf32> -> vector<8x1xf32>
    %24 = vector.broadcast %23 : vector<8x1xf32> to vector<8x128xf32>
    %25 = arith.mulf %20, %24 : vector<8x128xf32>
    %c0_8 = arith.constant 0 : index
    %c0_9 = arith.constant 0 : index
    %26 = vector.load %arg4[%c0_8, %c0_9] : memref<8x128xf32, #tpu.memory_space<vmem>>, vector<8x128xf32>
    tpu.vector_store %arg4[%c0_8, %c0_9], %25 {strides = array<i32>} : memref<8x128xf32, #tpu.memory_space<vmem>>, vector<8x128xf32>,
    return
  }
  func.func @transform_0(%arg0: i32) -> (i32, i32) {
    %c0_i32 = arith.constant 0 : i32
    %c0_i32_0 = arith.constant 0 : i32
    %c0_i32_1 = arith.constant 0 : i32
    return %c0_i32, %c0_i32_0 : i32, i32
  }
  func.func @transform_1(%arg0: i32) -> (i32, i32) {
    %c0_i32 = arith.constant 0 : i32
    %c0_i32_0 = arith.constant 0 : i32
    return %arg0, %c0_i32 : i32, i32
  }
  func.func @transform_2(%arg0: i32) -> (i32, i32) {
    %c0_i32 = arith.constant 0 : i32
    %c0_i32_0 = arith.constant 0 : i32
    return %arg0, %c0_i32 : i32, i32
  }
  func.func @transform_3(%arg0: i32) -> (i32, i32) {
    %c0_i32 = arith.constant 0 : i32
    %c0_i32_0 = arith.constant 0 : i32
    return %arg0, %c0_i32 : i32, i32
  }
}

</mosaic_0001>

<llo_original>
// kernel: tpu_custom_call.1
$region0: #{tpu_custom_call.1}
  #allocation0 [shape = 'u32[]', space=smem, size = 0x4, offset = 0x4, fixed_abs, tag = 'smem constant byte address 0x4 - core index']
  #allocation1 [shape = 'u32[144,128]{1,0:T(1,128)}', space=vmem, size = 0x12000, scoped, tag = 'internal scratch']
  %s0 = inlined_call_operand.vmem [shape: f32[1,128], index: 0, kind: input, shape index: {}]
  %s1 = inlined_call_operand.vmem [shape: s32[8,1], index: 1, kind: input, shape index: {}]
  %s2 = inlined_call_operand.vmem [shape: s32[8,1], index: 2, kind: input, shape index: {}]
  %s3 = inlined_call_operand.hbm [shape: f32[8,128], index: 3, kind: output, shape index: {}]
  %s4 = sld [smem:[#allocation0]]
  $region22: #{tpu_custom_call.1} parent=0
    _
  %s6 = ssub.s32 1, %s4
  %s7 = scalar_select 0, %s6, %s4
  $region1: #{tpu_custom_call.1} parent=0
    #allocation2 [shape = 'u8[4096]{0}', space=vmem, size = 0x1000, scoped, tag = 'output window, operand 0, single buffered']
    #allocation3 [shape = 's32[1]{0}', space=sflag, size = 0x4, scoped, tag = 'scoped memory for tpu_custom_call.1']
    %8 = vsyncpa [#allocation3], 0
    // Predicated region
    $region2: #{tpu_custom_call.1} parent=1 // pred_check
      _
    $region3: #{tpu_custom_call.1} parent=1 // pred_check_branch
      %10 = sbr.rel (0) target = $region5
    $region4: #{tpu_custom_call.1} parent=1 // pred_region
      _
    $region5: #{tpu_custom_call.1} parent=1 // pred_fallthru
      _
    // Predicated region
    $region6: #{tpu_custom_call.1} parent=1 // pred_check
      _
    $region7: #{tpu_custom_call.1} parent=1 // pred_check_branch
      %12 = sbr.rel (0) target = $region9
    $region8: #{tpu_custom_call.1} parent=1 // pred_region
      _
    $region9: #{tpu_custom_call.1} parent=1 // pred_fallthru
      _
    // Predicated region
    $region10: #{tpu_custom_call.1} parent=1 // pred_check
      _
    $region11: #{tpu_custom_call.1} parent=1 // pred_check_branch
      %14 = sbr.rel (0) target = $region13
    $region12: #{tpu_custom_call.1} parent=1 // pred_region
      _
    $region13: #{tpu_custom_call.1} parent=1 // pred_fallthru
      _
    %v15 = vld [vmem:[%s0] sm:$0x1]
    %v16 = vlaneseq
    %v17 = vand.u32 %v16, 127
    %v18 = vld [vmem:[%s1] sm:$0xff]
    %v19 = vld [vmem:[%s2] sm:$0xff]
    %20 = vset.pattern.permute.xlu0 0
    %21 = vperm.xlu0 %20, %v18
    %v22 = vpop.permute.xlu0 %21
    %vm23 = vcmp.ge.s32.totalorder %v17, %v22
    %24 = vset.pattern.permute.xlu0 0
    %25 = vperm.xlu0 %24, %v19
    %v26 = vpop.permute.xlu0 %25
    %vm27 = vcmp.le.s32.totalorder %v17, %v26
    %vm28 = vmand %vm23, %vm27
    %v29 = vsel %vm28, 0.0, -23.02585
    %v31 = vlaneseq
    %v32 = vshrl.u32 %v31, 7
    %v33 = vsub.s32 0, %v32
    %v34 = vrot.slane %v15, %v33
    %v36 = vadd.f32 %v34, %v29
    %37 = vmax.xlane.f32.xlu0 %v36
    %v38 = vpop.xlane.xlu0 %37
    %v39 = vsub.f32 %v36, %v38
    %v40 = vmul.f32 %v39, 1.442695
    %v41 = vpow.pop %v40
    %42 = vadd.xlane.f32.xlu0 %v41
    %v43 = vpop.xlane.xlu0 %42
    %v44 = vrcp.pop %v43
    %v45 = vmul.f32 %v41, %v44
    %46 = vst [vmem:[#allocation2] sm:$0xff] %v45
    // Predicated region
    $region14: #{tpu_custom_call.1} parent=1 // pred_check
      _
    $region15: #{tpu_custom_call.1} parent=1 // pred_check_branch
      %48 = sbr.rel (0) target = $region17
    $region16: #{tpu_custom_call.1} parent=1 // pred_region
      %s50 = ssub.s32 128, 128
      %51 = vsyncadd [#allocation3], %s50
      %s53 = sshll.u32 [#allocation2], 4
      %s54 = int_to_ptr.vmem [resolvable:$true] %s53
      %56 = dma.vmem_to_hbm [thread:$0]  %s54, 128, %s3, [#allocation3]
    $region17: #{tpu_custom_call.1} parent=1 // pred_fallthru
      _
    // Predicated region
    $region18: #{tpu_custom_call.1} parent=1 // pred_check
      _
    $region19: #{tpu_custom_call.1} parent=1 // pred_check_branch
      %58 = sbr.rel (0) target = $region21
    $region20: #{tpu_custom_call.1} parent=1 // pred_region
      %59 = dma.done [#allocation3], 128
    $region21: #{tpu_custom_call.1} parent=1 // pred_fallthru
      _
    %60 = vsyncpa [#allocation3], 1

</llo_original>
